<compile_context>
chip_gen: v6e
topology: v6e:2x2x1
jax: 0.10.0
libtpu: 0.0.40
codegen_flags: <defaults>
</compile_context>

<pallas_src>
import functools

import jax
import jax.numpy as jnp
from jax.experimental import pallas as pl
from jax.experimental.pallas import tpu as pltpu

# Layer sizes from the PyTorch module (fc1..fc6, in -> out chain).
DIMS = [6, 64, 32, 16, 16, 8, 1]
LANE = 128          # TPU lane width
BM_DEFAULT = 1024   # batch tile (lanes)


def mlp_kernel(x_ref,
               w1, b1, w2, b2, w3, b3, w4, b4, w5, b5, w6, b6,
               o_ref):
    """Whole 6-layer MLP on one (6, BM) batch tile. Activations are (feat, BM)."""
    f32 = jnp.float32
    h = jnp.dot(w1[...], x_ref[...], preferred_element_type=f32) + b1[...]   # fc1 (no act)
    h = jnp.tanh(jnp.dot(w2[...], h, preferred_element_type=f32) + b2[...])  # tanh(fc2)
    h = jnp.tanh(jnp.dot(w3[...], h, preferred_element_type=f32) + b3[...])  # tanh(fc3)
    h = jnp.tanh(jnp.dot(w4[...], h, preferred_element_type=f32) + b4[...])  # tanh(fc4)
    h = jnp.tanh(jnp.dot(w5[...], h, preferred_element_type=f32) + b5[...])  # tanh(fc5)
    o_ref[...] = jnp.dot(w6[...], h, preferred_element_type=f32) + b6[...]   # fc6 (no act)


def make_params(key):
    """PyTorch-Linear-style init: U(-1/sqrt(fan_in), 1/sqrt(fan_in)).

    Weights are kept in PyTorch (out_features, in_features) orientation; biases
    are stored as (out_features, 1) so they broadcast along the lane (batch) axis.
    """
    params = []
    for i in range(6):
        fan_in, fan_out = DIMS[i], DIMS[i + 1]
        key, kw, kb = jax.random.split(key, 3)
        bound = 1.0 / jnp.sqrt(jnp.float32(fan_in))
        w = jax.random.uniform(kw, (fan_out, fan_in), jnp.float32, -bound, bound)
        b = jax.random.uniform(kb, (fan_out, 1), jnp.float32, -bound, bound)
        params += [w, b]
    return params


@functools.partial(jax.jit, static_argnames=("bm",))
def mlp_forward(x, params, bm=BM_DEFAULT):
    """x: (B, 6) float32 -> (B, 1) float32, matching MyModule.forward."""
    B, F = x.shape
    assert F == DIMS[0]

    # Clamp the batch tile for tiny inputs (one 128-lane tile, grid=(1,)),
    # otherwise use large lane-dense tiles and pad the batch to a multiple.
    bm = min(bm, pl.cdiv(B, LANE) * LANE)
    b_pad = pl.cdiv(B, bm) * bm

    # Batch-on-lanes layout: (6, B_pad), zero-padded rows are sliced off at the end.
    x_t = jnp.zeros((F, b_pad), jnp.float32).at[:, :B].set(x.T.astype(jnp.float32))

    grid = (b_pad // bm,)

    # Weights/biases: full (small) arrays, grid-invariant index_map -> resident
    # across every batch tile.
    param_specs = [pl.BlockSpec(p.shape, lambda i: (0, 0)) for p in params]

    # Advisory cost: this workload is HBM-bound on streaming x, not MXU-bound.
    flops = 2 * b_pad * sum(DIMS[i] * DIMS[i + 1] for i in range(6))
    transcendentals = b_pad * sum(DIMS[i + 1] for i in range(1, 5))  # tanh outputs
    bytes_accessed = 4 * (F * b_pad + b_pad * DIMS[-1]
                          + sum(int(p.size) for p in params))

    out_t = pl.pallas_call(
        mlp_kernel,
        out_shape=jax.ShapeDtypeStruct((DIMS[-1], b_pad), jnp.float32),
        grid_spec=pltpu.PrefetchScalarGridSpec(
            num_scalar_prefetch=0,
            grid=grid,
            in_specs=[pl.BlockSpec((F, bm), lambda i: (0, i))] + param_specs,
            out_specs=pl.BlockSpec((DIMS[-1], bm), lambda i: (0, i)),
        ),
        compiler_params=pltpu.CompilerParams(
            dimension_semantics=("parallel",),
        ),
        cost_estimate=pl.CostEstimate(
            flops=flops,
            transcendentals=transcendentals,
            bytes_accessed=bytes_accessed,
        ),
    )(x_t, *params)

    return out_t[:, :B].T  # (B, 1)


def mlp_reference(x, params):
    w1, b1, w2, b2, w3, b3, w4, b4, w5, b5, w6, b6 = params

    def lin(h, w, b):
        return h @ w.T + b.reshape(1, -1)

    h = lin(x, w1, b1)
    h = jnp.tanh(lin(h, w2, b2))
    h = jnp.tanh(lin(h, w3, b3))
    h = jnp.tanh(lin(h, w4, b4))
    h = jnp.tanh(lin(h, w5, b5))
    return lin(h, w6, b6)


if __name__ == "__main__":
    key = jax.random.PRNGKey(0)
    kx, kp = jax.random.split(key)
    params = make_params(kp)

    # Small test consistent with the module: x is (batch, 6).
    batch = 16
    x = jax.random.normal(kx, (batch, DIMS[0]), jnp.float32)
    out = jax.block_until_ready(mlp_forward(x, params))
    ref = mlp_reference(x, params)
    assert out.shape == (batch, 1)
    assert jnp.allclose(out, ref, atol=1e-5, rtol=1e-5), "mismatch vs reference (small)"

    # Larger batch exercising the multi-step grid with 1024-lane tiles.
    batch2 = 4096
    x2 = jax.random.normal(kx, (batch2, DIMS[0]), jnp.float32)
    out2 = jax.block_until_ready(mlp_forward(x2, params))
    ref2 = mlp_reference(x2, params)
    assert out2.shape == (batch2, 1)
    assert jnp.allclose(out2, ref2, atol=1e-5, rtol=1e-5), "mismatch vs reference (large)"

    print("KERNEL_OK")
</pallas_src>

<mosaic_0001>
module attributes {stable_mosaic.version = 11 : i64} {
  func.func @mlp_kernel(%arg0: i32, %arg1: memref<6x128xf32, #tpu.memory_space<vmem>>, %arg2: memref<64x6xf32, #tpu.memory_space<vmem>>, %arg3: memref<64x1xf32, #tpu.memory_space<vmem>>, %arg4: memref<32x64xf32, #tpu.memory_space<vmem>>, %arg5: memref<32x1xf32, #tpu.memory_space<vmem>>, %arg6: memref<16x32xf32, #tpu.memory_space<vmem>>, %arg7: memref<16x1xf32, #tpu.memory_space<vmem>>, %arg8: memref<16x16xf32, #tpu.memory_space<vmem>>, %arg9: memref<16x1xf32, #tpu.memory_space<vmem>>, %arg10: memref<8x16xf32, #tpu.memory_space<vmem>>, %arg11: memref<8x1xf32, #tpu.memory_space<vmem>>, %arg12: memref<1x8xf32, #tpu.memory_space<vmem>>, %arg13: memref<1x1xf32, #tpu.memory_space<vmem>>, %arg14: memref<1x128xf32, #tpu.memory_space<vmem>>) attributes {dimension_semantics = [#tpu.dimension_semantics<parallel>], iteration_bounds = array<i64: 1>, scalar_prefetch = 0 : i64, scratch_operands = 0 : i64, tpu.core_type = #tpu.core_type<tc>, window_params = [{transform_indices = @transform_0, window_bounds = array<i64: 6, 128>}, {pipeline_mode = #tpu.pipeline_mode<synchronous>, transform_indices = @transform_1, window_bounds = array<i64: 64, 6>}, {pipeline_mode = #tpu.pipeline_mode<synchronous>, transform_indices = @transform_2, window_bounds = array<i64: 64, 1>}, {pipeline_mode = #tpu.pipeline_mode<synchronous>, transform_indices = @transform_3, window_bounds = array<i64: 32, 64>}, {pipeline_mode = #tpu.pipeline_mode<synchronous>, transform_indices = @transform_4, window_bounds = array<i64: 32, 1>}, {pipeline_mode = #tpu.pipeline_mode<synchronous>, transform_indices = @transform_5, window_bounds = array<i64: 16, 32>}, {pipeline_mode = #tpu.pipeline_mode<synchronous>, transform_indices = @transform_6, window_bounds = array<i64: 16, 1>}, {pipeline_mode = #tpu.pipeline_mode<synchronous>, transform_indices = @transform_7, window_bounds = array<i64: 16, 16>}, {pipeline_mode = #tpu.pipeline_mode<synchronous>, transform_indices = @transform_8, window_bounds = array<i64: 16, 1>}, {pipeline_mode = #tpu.pipeline_mode<synchronous>, transform_indices = @transform_9, window_bounds = array<i64: 8, 16>}, {pipeline_mode = #tpu.pipeline_mode<synchronous>, transform_indices = @transform_10, window_bounds = array<i64: 8, 1>}, {pipeline_mode = #tpu.pipeline_mode<synchronous>, transform_indices = @transform_11, window_bounds = array<i64: 1, 8>}, {pipeline_mode = #tpu.pipeline_mode<synchronous>, transform_indices = @transform_12, window_bounds = array<i64: 1, 1>}, {transform_indices = @transform_13, window_bounds = array<i64: 1, 128>}]} {
    %c0 = arith.constant 0 : index
    %c0_0 = arith.constant 0 : index
    %0 = vector.load %arg2[%c0, %c0_0] : memref<64x6xf32, #tpu.memory_space<vmem>>, vector<64x6xf32>
    %c0_1 = arith.constant 0 : index
    %c0_2 = arith.constant 0 : index
    %1 = vector.load %arg1[%c0_1, %c0_2] : memref<6x128xf32, #tpu.memory_space<vmem>>, vector<6x128xf32>
    %cst = arith.constant dense<0.000000e+00> : vector<64x128xf32>
    %2 = tpu.matmul %0, %1, %cst {dimension_numbers = #tpu.dot_dimension_numbers<[1], [0], [0], [1], [0, 0, 1, 1], [], []>} : vector<64x6xf32>, vector<6x128xf32>, vector<64x128xf32> -> vector<64x128xf32>
    %c0_3 = arith.constant 0 : index
    %c0_4 = arith.constant 0 : index
    %3 = vector.load %arg3[%c0_3, %c0_4] : memref<64x1xf32, #tpu.memory_space<vmem>>, vector<64x1xf32>
    %4 = vector.broadcast %3 : vector<64x1xf32> to vector<64x128xf32>
    %5 = arith.addf %2, %4 : vector<64x128xf32>
    %c0_5 = arith.constant 0 : index
    %c0_6 = arith.constant 0 : index
    %6 = vector.load %arg4[%c0_5, %c0_6] : memref<32x64xf32, #tpu.memory_space<vmem>>, vector<32x64xf32>
    %cst_7 = arith.constant dense<0.000000e+00> : vector<32x128xf32>
    %7 = tpu.matmul %6, %5, %cst_7 {dimension_numbers = #tpu.dot_dimension_numbers<[1], [0], [0], [1], [0, 0, 1, 1], [], []>} : vector<32x64xf32>, vector<64x128xf32>, vector<32x128xf32> -> vector<32x128xf32>
    %c0_8 = arith.constant 0 : index
    %c0_9 = arith.constant 0 : index
    %8 = vector.load %arg5[%c0_8, %c0_9] : memref<32x1xf32, #tpu.memory_space<vmem>>, vector<32x1xf32>
    %9 = vector.broadcast %8 : vector<32x1xf32> to vector<32x128xf32>
    %10 = arith.addf %7, %9 : vector<32x128xf32>
    %11 = math.tanh %10 : vector<32x128xf32>
    %c0_10 = arith.constant 0 : index
    %c0_11 = arith.constant 0 : index
    %12 = vector.load %arg6[%c0_10, %c0_11] : memref<16x32xf32, #tpu.memory_space<vmem>>, vector<16x32xf32>
    %cst_12 = arith.constant dense<0.000000e+00> : vector<16x128xf32>
    %13 = tpu.matmul %12, %11, %cst_12 {dimension_numbers = #tpu.dot_dimension_numbers<[1], [0], [0], [1], [0, 0, 1, 1], [], []>} : vector<16x32xf32>, vector<32x128xf32>, vector<16x128xf32> -> vector<16x128xf32>
    %c0_13 = arith.constant 0 : index
    %c0_14 = arith.constant 0 : index
    %14 = vector.load %arg7[%c0_13, %c0_14] : memref<16x1xf32, #tpu.memory_space<vmem>>, vector<16x1xf32>
    %15 = vector.broadcast %14 : vector<16x1xf32> to vector<16x128xf32>
    %16 = arith.addf %13, %15 : vector<16x128xf32>
    %17 = math.tanh %16 : vector<16x128xf32>
    %c0_15 = arith.constant 0 : index
    %c0_16 = arith.constant 0 : index
    %18 = vector.load %arg8[%c0_15, %c0_16] : memref<16x16xf32, #tpu.memory_space<vmem>>, vector<16x16xf32>
    %cst_17 = arith.constant dense<0.000000e+00> : vector<16x128xf32>
    %19 = tpu.matmul %18, %17, %cst_17 {dimension_numbers = #tpu.dot_dimension_numbers<[1], [0], [0], [1], [0, 0, 1, 1], [], []>} : vector<16x16xf32>, vector<16x128xf32>, vector<16x128xf32> -> vector<16x128xf32>
    %c0_18 = arith.constant 0 : index
    %c0_19 = arith.constant 0 : index
    %20 = vector.load %arg9[%c0_18, %c0_19] : memref<16x1xf32, #tpu.memory_space<vmem>>, vector<16x1xf32>
    %21 = vector.broadcast %20 : vector<16x1xf32> to vector<16x128xf32>
    %22 = arith.addf %19, %21 : vector<16x128xf32>
    %23 = math.tanh %22 : vector<16x128xf32>
    %c0_20 = arith.constant 0 : index
    %c0_21 = arith.constant 0 : index
    %24 = vector.load %arg10[%c0_20, %c0_21] : memref<8x16xf32, #tpu.memory_space<vmem>>, vector<8x16xf32>
    %cst_22 = arith.constant dense<0.000000e+00> : vector<8x128xf32>
    %25 = tpu.matmul %24, %23, %cst_22 {dimension_numbers = #tpu.dot_dimension_numbers<[1], [0], [0], [1], [0, 0, 1, 1], [], []>} : vector<8x16xf32>, vector<16x128xf32>, vector<8x128xf32> -> vector<8x128xf32>
    %c0_23 = arith.constant 0 : index
    %c0_24 = arith.constant 0 : index
    %26 = vector.load %arg11[%c0_23, %c0_24] : memref<8x1xf32, #tpu.memory_space<vmem>>, vector<8x1xf32>
    %27 = vector.broadcast %26 : vector<8x1xf32> to vector<8x128xf32>
    %28 = arith.addf %25, %27 : vector<8x128xf32>
    %29 = math.tanh %28 : vector<8x128xf32>
    %c0_25 = arith.constant 0 : index
    %c0_26 = arith.constant 0 : index
    %30 = vector.load %arg12[%c0_25, %c0_26] : memref<1x8xf32, #tpu.memory_space<vmem>>, vector<1x8xf32>
    %cst_27 = arith.constant dense<0.000000e+00> : vector<1x128xf32>
    %31 = tpu.matmul %30, %29, %cst_27 {dimension_numbers = #tpu.dot_dimension_numbers<[1], [0], [0], [1], [0, 0, 1, 1], [], []>} : vector<1x8xf32>, vector<8x128xf32>, vector<1x128xf32> -> vector<1x128xf32>
    %c0_28 = arith.constant 0 : index
    %c0_29 = arith.constant 0 : index
    %32 = vector.load %arg13[%c0_28, %c0_29] : memref<1x1xf32, #tpu.memory_space<vmem>>, vector<1x1xf32>
    %33 = vector.broadcast %32 : vector<1x1xf32> to vector<1x128xf32>
    %34 = arith.addf %31, %33 : vector<1x128xf32>
    %c0_30 = arith.constant 0 : index
    %c0_31 = arith.constant 0 : index
    %35 = vector.load %arg14[%c0_30, %c0_31] : memref<1x128xf32, #tpu.memory_space<vmem>>, vector<1x128xf32>
    tpu.vector_store %arg14[%c0_30, %c0_31], %34 {strides = array<i32>} : memref<1x128xf32, #tpu.memory_space<vmem>>, vector<1x128xf32>,
    return
  }
  func.func @transform_0(%arg0: i32) -> (i32, i32) {
    %c0_i32 = arith.constant 0 : i32
    %c0_i32_0 = arith.constant 0 : i32
    return %c0_i32, %arg0 : i32, i32
  }
  func.func @transform_1(%arg0: i32) -> (i32, i32) {
    %c0_i32 = arith.constant 0 : i32
    %c0_i32_0 = arith.constant 0 : i32
    %c0_i32_1 = arith.constant 0 : i32
    return %c0_i32, %c0_i32_0 : i32, i32
  }
  func.func @transform_2(%arg0: i32) -> (i32, i32) {
    %c0_i32 = arith.constant 0 : i32
    %c0_i32_0 = arith.constant 0 : i32
    %c0_i32_1 = arith.constant 0 : i32
    return %c0_i32, %c0_i32_0 : i32, i32
  }
  func.func @transform_3(%arg0: i32) -> (i32, i32) {
    %c0_i32 = arith.constant 0 : i32
    %c0_i32_0 = arith.constant 0 : i32
    %c0_i32_1 = arith.constant 0 : i32
    return %c0_i32, %c0_i32_0 : i32, i32
  }
  func.func @transform_4(%arg0: i32) -> (i32, i32) {
    %c0_i32 = arith.constant 0 : i32
    %c0_i32_0 = arith.constant 0 : i32
    %c0_i32_1 = arith.constant 0 : i32
    return %c0_i32, %c0_i32_0 : i32, i32
  }
  func.func @transform_5(%arg0: i32) -> (i32, i32) {
    %c0_i32 = arith.constant 0 : i32
    %c0_i32_0 = arith.constant 0 : i32
    %c0_i32_1 = arith.constant 0 : i32
    return %c0_i32, %c0_i32_0 : i32, i32
  }
  func.func @transform_6(%arg0: i32) -> (i32, i32) {
    %c0_i32 = arith.constant 0 : i32
    %c0_i32_0 = arith.constant 0 : i32
    %c0_i32_1 = arith.constant 0 : i32
    return %c0_i32, %c0_i32_0 : i32, i32
  }
  func.func @transform_7(%arg0: i32) -> (i32, i32) {
    %c0_i32 = arith.constant 0 : i32
    %c0_i32_0 = arith.constant 0 : i32
    %c0_i32_1 = arith.constant 0 : i32
    return %c0_i32, %c0_i32_0 : i32, i32
  }
  func.func @transform_8(%arg0: i32) -> (i32, i32) {
    %c0_i32 = arith.constant 0 : i32
    %c0_i32_0 = arith.constant 0 : i32
    %c0_i32_1 = arith.constant 0 : i32
    return %c0_i32, %c0_i32_0 : i32, i32
  }
  func.func @transform_9(%arg0: i32) -> (i32, i32) {
    %c0_i32 = arith.constant 0 : i32
    %c0_i32_0 = arith.constant 0 : i32
    %c0_i32_1 = arith.constant 0 : i32
    return %c0_i32, %c0_i32_0 : i32, i32
  }
  func.func @transform_10(%arg0: i32) -> (i32, i32) {
    %c0_i32 = arith.constant 0 : i32
    %c0_i32_0 = arith.constant 0 : i32
    %c0_i32_1 = arith.constant 0 : i32
    return %c0_i32, %c0_i32_0 : i32, i32
  }
  func.func @transform_11(%arg0: i32) -> (i32, i32) {
    %c0_i32 = arith.constant 0 : i32
    %c0_i32_0 = arith.constant 0 : i32
    %c0_i32_1 = arith.constant 0 : i32
    return %c0_i32, %c0_i32_0 : i32, i32
  }
  func.func @transform_12(%arg0: i32) -> (i32, i32) {
    %c0_i32 = arith.constant 0 : i32
    %c0_i32_0 = arith.constant 0 : i32
    %c0_i32_1 = arith.constant 0 : i32
    return %c0_i32, %c0_i32_0 : i32, i32
  }
  func.func @transform_13(%arg0: i32) -> (i32, i32) {
    %c0_i32 = arith.constant 0 : i32
    %c0_i32_0 = arith.constant 0 : i32
    return %c0_i32, %arg0 : i32, i32
  }
}

</mosaic_0001>

<llo_original>
// kernel: mlp_forward.1
$region0: #{mlp_forward.1}
  #allocation0 [shape = 'u32[]', space=smem, size = 0x4, offset = 0x4, fixed_abs, tag = 'smem constant byte address 0x4 - core index']
  #allocation1 [shape = 'u32[144,128]{1,0:T(1,128)}', space=vmem, size = 0x12000, scoped, tag = 'internal scratch']
  #allocation2 [shape = 'f32[1,1]{1,0:T(1,128)S(1)}', space=vmem, size = 0x200, scoped, tag = 'scoped memory for mlp_forward.1']
  %s0 = inlined_call_operand.vmem [shape: f32[6,128], index: 0, kind: input, shape index: {}]
  %s1 = inlined_call_operand.vmem [shape: f32[64,6], index: 1, kind: input, shape index: {}]
  %s2 = inlined_call_operand.vmem [shape: f32[64,1], index: 2, kind: input, shape index: {}]
  %s3 = inlined_call_operand.vmem [shape: f32[32,64], index: 3, kind: input, shape index: {}]
  %s4 = inlined_call_operand.vmem [shape: f32[32,1], index: 4, kind: input, shape index: {}]
  %s5 = inlined_call_operand.vmem [shape: f32[16,32], index: 5, kind: input, shape index: {}]
  %s6 = inlined_call_operand.vmem [shape: f32[16,1], index: 6, kind: input, shape index: {}]
  %s7 = inlined_call_operand.vmem [shape: f32[16,16], index: 7, kind: input, shape index: {}]
  %s8 = inlined_call_operand.vmem [shape: f32[16,1], index: 8, kind: input, shape index: {}]
  %s9 = inlined_call_operand.vmem [shape: f32[8,16], index: 9, kind: input, shape index: {}]
  %s10 = inlined_call_operand.vmem [shape: f32[8,1], index: 10, kind: input, shape index: {}]
  %s11 = inlined_call_operand.vmem [shape: f32[1,8], index: 11, kind: input, shape index: {}]
  %s12 = inlined_call_operand.<no memory space> [shape: f32[1,1], index: 12, kind: input, shape index: {}]
  %s13 = inlined_call_operand.vmem [shape: f32[1,128], index: 13, kind: output, shape index: {}]
  %s14 = sld [smem:[#allocation0]]
  $region62: #{mlp_forward.1} parent=0
    _
  %s16 = ssub.s32 1, %s14
  %s17 = scalar_select 0, %s16, %s14
  %v18 = vstv %s12
  %19 = vst [vmem:[#allocation2] sm:$0x1] %v18
  // Predicated region
  $region2: #{mlp_forward.1} parent=0 // pred_check
    _
  $region3: #{mlp_forward.1} parent=0 // pred_check_branch
    %21 = sbr.rel (0) target = $region5
  $region4: #{mlp_forward.1} parent=0 // pred_region
    _
  $region5: #{mlp_forward.1} parent=0 // pred_fallthru
    _
  // Predicated region
  $region6: #{mlp_forward.1} parent=0 // pred_check
    _
  $region7: #{mlp_forward.1} parent=0 // pred_check_branch
    %23 = sbr.rel (0) target = $region9
  $region8: #{mlp_forward.1} parent=0 // pred_region
    _
  $region9: #{mlp_forward.1} parent=0 // pred_fallthru
    _
  // Predicated region
  $region10: #{mlp_forward.1} parent=0 // pred_check
    _
  $region11: #{mlp_forward.1} parent=0 // pred_check_branch
    %25 = sbr.rel (0) target = $region13
  $region12: #{mlp_forward.1} parent=0 // pred_region
    _
  $region13: #{mlp_forward.1} parent=0 // pred_fallthru
    _
  // Predicated region
  $region14: #{mlp_forward.1} parent=0 // pred_check
    _
  $region15: #{mlp_forward.1} parent=0 // pred_check_branch
    %27 = sbr.rel (0) target = $region17
  $region16: #{mlp_forward.1} parent=0 // pred_region
    _
  $region17: #{mlp_forward.1} parent=0 // pred_fallthru
    _
  // Predicated region
  $region18: #{mlp_forward.1} parent=0 // pred_check
    _
  $region19: #{mlp_forward.1} parent=0 // pred_check_branch
    %29 = sbr.rel (0) target = $region21
  $region20: #{mlp_forward.1} parent=0 // pred_region
    _
  $region21: #{mlp_forward.1} parent=0 // pred_fallthru
    _
  // Predicated region
  $region22: #{mlp_forward.1} parent=0 // pred_check
    _
  $region23: #{mlp_forward.1} parent=0 // pred_check_branch
    %31 = sbr.rel (0) target = $region25
  $region24: #{mlp_forward.1} parent=0 // pred_region
    _
  $region25: #{mlp_forward.1} parent=0 // pred_fallthru
    _
  // Predicated region
  $region26: #{mlp_forward.1} parent=0 // pred_check
    _
  $region27: #{mlp_forward.1} parent=0 // pred_check_branch
    %33 = sbr.rel (0) target = $region29
  $region28: #{mlp_forward.1} parent=0 // pred_region
    _
  $region29: #{mlp_forward.1} parent=0 // pred_fallthru
    _
  // Predicated region
  $region30: #{mlp_forward.1} parent=0 // pred_check
    _
  $region31: #{mlp_forward.1} parent=0 // pred_check_branch
    %35 = sbr.rel (0) target = $region33
  $region32: #{mlp_forward.1} parent=0 // pred_region
    _
  $region33: #{mlp_forward.1} parent=0 // pred_fallthru
    _
  // Predicated region
  $region34: #{mlp_forward.1} parent=0 // pred_check
    _
  $region35: #{mlp_forward.1} parent=0 // pred_check_branch
    %37 = sbr.rel (0) target = $region37
  $region36: #{mlp_forward.1} parent=0 // pred_region
    _
  $region37: #{mlp_forward.1} parent=0 // pred_fallthru
    _
  // Predicated region
  $region38: #{mlp_forward.1} parent=0 // pred_check
    _
  $region39: #{mlp_forward.1} parent=0 // pred_check_branch
    %39 = sbr.rel (0) target = $region41
  $region40: #{mlp_forward.1} parent=0 // pred_region
    _
  $region41: #{mlp_forward.1} parent=0 // pred_fallthru
    _
  // Predicated region
  $region42: #{mlp_forward.1} parent=0 // pred_check
    _
  $region43: #{mlp_forward.1} parent=0 // pred_check_branch
    %41 = sbr.rel (0) target = $region45
  $region44: #{mlp_forward.1} parent=0 // pred_region
    _
  $region45: #{mlp_forward.1} parent=0 // pred_fallthru
    _
  // Predicated region
  $region46: #{mlp_forward.1} parent=0 // pred_check
    _
  $region47: #{mlp_forward.1} parent=0 // pred_check_branch
    %43 = sbr.rel (0) target = $region49
  $region48: #{mlp_forward.1} parent=0 // pred_region
    _
  $region49: #{mlp_forward.1} parent=0 // pred_fallthru
    _
  // Predicated region
  $region50: #{mlp_forward.1} parent=0 // pred_check
    _
  $region51: #{mlp_forward.1} parent=0 // pred_check_branch
    %45 = sbr.rel (0) target = $region53
  $region52: #{mlp_forward.1} parent=0 // pred_region
    _
  $region53: #{mlp_forward.1} parent=0 // pred_fallthru
    _
  %v46 = vld [vmem:[%s1] sm:$0xff]
  %v47 = vld [vmem:[%s1 + $0x8] sm:$0xff]
  %v48 = vld [vmem:[%s1 + $0x10] sm:$0xff]
  %v49 = vld [vmem:[%s1 + $0x18] sm:$0xff]
  %v50 = vld [vmem:[%s1 + $0x20] sm:$0xff]
  %v51 = vld [vmem:[%s1 + $0x28] sm:$0xff]
  %v52 = vld [vmem:[%s1 + $0x30] sm:$0xff]
  %v53 = vld [vmem:[%s1 + $0x38] sm:$0xff]
  %v54 = vld [vmem:[%s0] sm:$0x3f]
  %v55 = vld [vmem:[%s2] sm:$0xff]
  %v56 = vld [vmem:[%s2 + $0x8] sm:$0xff]
  %v57 = vld [vmem:[%s2 + $0x10] sm:$0xff]
  %v58 = vld [vmem:[%s2 + $0x18] sm:$0xff]
  %v59 = vld [vmem:[%s2 + $0x20] sm:$0xff]
  %v60 = vld [vmem:[%s2 + $0x28] sm:$0xff]
  %v61 = vld [vmem:[%s2 + $0x30] sm:$0xff]
  %v62 = vld [vmem:[%s2 + $0x38] sm:$0xff]
  %64 = vset.pattern.permute.xlu0 0
  %65 = vperm.xlu0 %64, %v55
  %v66 = vpop.permute.xlu0 %65
  %69 = vset.pattern.permute.xlu0 0
  %70 = vperm.xlu0 %69, %v56
  %v71 = vpop.permute.xlu0 %70
  %74 = vset.pattern.permute.xlu0 0
  %75 = vperm.xlu0 %74, %v57
  %v76 = vpop.permute.xlu0 %75
  %79 = vset.pattern.permute.xlu0 0
  %80 = vperm.xlu0 %79, %v58
  %v81 = vpop.permute.xlu0 %80
  %84 = vset.pattern.permute.xlu0 0
  %85 = vperm.xlu0 %84, %v59
  %v86 = vpop.permute.xlu0 %85
  %89 = vset.pattern.permute.xlu0 0
  %90 = vperm.xlu0 %89, %v60
  %v91 = vpop.permute.xlu0 %90
  %94 = vset.pattern.permute.xlu0 0
  %95 = vperm.xlu0 %94, %v61
  %v96 = vpop.permute.xlu0 %95
  %99 = vset.pattern.permute.xlu0 0
  %100 = vperm.xlu0 %99, %v62
  %v101 = vpop.permute.xlu0 %100
  %vm103 = vcmask 48128
  %v105 = vsel %vm103, %v46, 0
  %v108 = vsel %vm103, %v47, 0
  %v111 = vsel %vm103, %v48, 0
  %v114 = vsel %vm103, %v49, 0
  %v117 = vsel %vm103, %v50, 0
  %v120 = vsel %vm103, %v51, 0
  %v123 = vsel %vm103, %v52, 0
  %v126 = vsel %vm103, %v53, 0
  %vm128 = vcmask 1045504
  %v130 = vsel %vm128, %v54, 0
  %132 = vmatprep.subr.mxu0 0.0
  %133 = vmatpush1.msra.mxu0 0.0
  %134 = vmatprep.subr.mxu0 0.0
  %135 = vmatpush1.msra.mxu0 0.0
  %136 = vmatprep.subr.mxu0 0.0
  %137 = vmatpush1.msra.mxu0 0.0
  %138 = vmatprep.subr.mxu0 0.0
  %139 = vmatpush1.msra.mxu0 0.0
  %140 = vmatprep.subr.mxu0 0.0
  %141 = vmatpush1.msra.mxu0 0.0
  %142 = vmatprep.subr.mxu0 0.0
  %143 = vmatpush1.msra.mxu0 0.0
  %144 = vmatprep.subr.mxu0 0.0
  %145 = vmatpush1.msra.mxu0 0.0
  %146 = vmatprep.subr.mxu0 0.0
  %147 = vmatpush1.msra.mxu0 0.0
  %148 = vmatprep.subr.mxu0 0.0
  %149 = vmatpush1.msra.mxu0 0.0
  %150 = vmatprep.subr.mxu0 0.0
  %151 = vmatpush1.msra.mxu0 0.0
  %152 = vmatprep.subr.mxu0 0.0
  %153 = vmatpush1.msra.mxu0 0.0
  %154 = vmatprep.subr.mxu0 0.0
  %155 = vmatpush1.msra.mxu0 0.0
  %156 = vmatprep.subr.mxu0 0.0
  %157 = vmatpush1.msra.mxu0 0.0
  %158 = vmatprep.subr.mxu0 0.0
  %159 = vmatpush1.msra.mxu0 0.0
  %160 = vmatprep.subr.mxu0 0.0
  %161 = vmatpush1.msra.mxu0 0.0
  %162 = vmatprep.subr.mxu0 0.0
  %163 = vmatpush1.msra.mxu0 %v130
  %164 = vmatprep.subr.mxu0 0.0
  %165 = vmatpush2.msra.mxu0 0.0
  %166 = vmatprep.subr.mxu0 0.0
  %167 = vmatpush2.msra.mxu0 0.0
  %168 = vmatprep.subr.mxu0 0.0
  %169 = vmatpush2.msra.mxu0 0.0
  %170 = vmatprep.subr.mxu0 0.0
  %171 = vmatpush2.msra.mxu0 0.0
  %172 = vmatprep.subr.mxu0 0.0
  %173 = vmatpush2.msra.mxu0 0.0
  %174 = vmatprep.subr.mxu0 0.0
  %175 = vmatpush2.msra.mxu0 0.0
  %176 = vmatprep.subr.mxu0 0.0
  %177 = vmatpush2.msra.mxu0 0.0
  %178 = vmatprep.subr.mxu0 0.0
  %179 = vmatpush2.msra.mxu0 0.0
  %180 = vmatprep.subr.mxu0 0.0
  %181 = vmatpush2.msra.mxu0 0.0
  %182 = vmatprep.subr.mxu0 0.0
  %183 = vmatpush2.msra.mxu0 0.0
  %184 = vmatprep.subr.mxu0 0.0
  %185 = vmatpush2.msra.mxu0 0.0
  %186 = vmatprep.subr.mxu0 0.0
  %187 = vmatpush2.msra.mxu0 0.0
  %188 = vmatprep.subr.mxu0 0.0
  %189 = vmatpush2.msra.mxu0 0.0
  %190 = vmatprep.subr.mxu0 0.0
  %191 = vmatpush2.msra.mxu0 0.0
  %192 = vmatprep.subr.mxu0 0.0
  %193 = vmatpush2.msra.mxu0 0.0
  %194 = vmatprep.subr.mxu0 0.0
  %195 = vmatpush2.msra.mxu0 0.0
  %196 = vmatprep.mubr.f32.mxu0 0.0
  %197 = vmatmul.mubr.f32.gmra.mxu0 %v105
  %v198 = vpop.f32.mrf.mxu0
  %v199 = vadd.f32 %v66, %v198
  %v200 = vpop.f32.mrf.mxu0
  %201 = vmatprep.mubr.f32.mxu0 0.0
  %202 = vmatmul.mubr.f32.gmra.mxu0 %v108
  %v203 = vpop.f32.mrf.mxu0
  %v204 = vadd.f32 %v71, %v203
  %v205 = vpop.f32.mrf.mxu0
  %206 = vmatprep.mubr.f32.mxu0 0.0
  %207 = vmatmul.mubr.f32.gmra.mxu0 %v111
  %v208 = vpop.f32.mrf.mxu0
  %v209 = vadd.f32 %v76, %v208
  %v210 = vpop.f32.mrf.mxu0
  %211 = vmatprep.mubr.f32.mxu0 0.0
  %212 = vmatmul.mubr.f32.gmra.mxu0 %v114
  %v213 = vpop.f32.mrf.mxu0
  %v214 = vadd.f32 %v81, %v213
  %v215 = vpop.f32.mrf.mxu0
  %216 = vmatprep.mubr.f32.mxu0 0.0
  %217 = vmatmul.mubr.f32.gmra.mxu0 %v117
  %v218 = vpop.f32.mrf.mxu0
  %v219 = vadd.f32 %v86, %v218
  %v220 = vpop.f32.mrf.mxu0
  %221 = vmatprep.mubr.f32.mxu0 0.0
  %222 = vmatmul.mubr.f32.gmra.mxu0 %v120
  %v223 = vpop.f32.mrf.mxu0
  %v224 = vadd.f32 %v91, %v223
  %v225 = vpop.f32.mrf.mxu0
  %226 = vmatprep.mubr.f32.mxu0 0.0
  %227 = vmatmul.mubr.f32.gmra.mxu0 %v123
  %v228 = vpop.f32.mrf.mxu0
  %v229 = vadd.f32 %v96, %v228
  %v230 = vpop.f32.mrf.mxu0
  %231 = vmatprep.mubr.f32.mxu0 0.0
  %232 = vmatmul.mubr.f32.gmra.mxu0 %v126
  %v233 = vpop.f32.mrf.mxu0
  %v234 = vadd.f32 %v101, %v233
  %v235 = vpop.f32.mrf.mxu0
  %236 = vdwg.mxu0
  %v237 = vld [vmem:[%s3] sm:$0xff]
  %v238 = vld [vmem:[%s3 + $0x8] sm:$0xff]
  %v239 = vld [vmem:[%s3 + $0x10] sm:$0xff]
  %v240 = vld [vmem:[%s3 + $0x18] sm:$0xff]
  %v241 = vld [vmem:[%s4] sm:$0xff]
  %v242 = vld [vmem:[%s4 + $0x8] sm:$0xff]
  %v243 = vld [vmem:[%s4 + $0x10] sm:$0xff]
  %v244 = vld [vmem:[%s4 + $0x18] sm:$0xff]
  %246 = vset.pattern.permute.xlu0 0
  %247 = vperm.xlu0 %246, %v241
  %v248 = vpop.permute.xlu0 %247
  %251 = vset.pattern.permute.xlu0 0
  %252 = vperm.xlu0 %251, %v242
  %v253 = vpop.permute.xlu0 %252
  %256 = vset.pattern.permute.xlu0 0
  %257 = vperm.xlu0 %256, %v243
  %v258 = vpop.permute.xlu0 %257
  %261 = vset.pattern.permute.xlu0 0
  %262 = vperm.xlu0 %261, %v244
  %v263 = vpop.permute.xlu0 %262
  %vm265 = vcmask 523264
  %v267 = vsel %vm265, %v237, 0
  %v270 = vsel %vm265, %v238, 0
  %v273 = vsel %vm265, %v239, 0
  %v276 = vsel %vm265, %v240, 0
  %278 = vmatprep.subr.mxu0 0.0
  %279 = vmatpush1.msra.mxu0 0.0
  %280 = vmatprep.subr.mxu0 0.0
  %281 = vmatpush1.msra.mxu0 0.0
  %282 = vmatprep.subr.mxu0 0.0
  %283 = vmatpush1.msra.mxu0 0.0
  %284 = vmatprep.subr.mxu0 0.0
  %285 = vmatpush1.msra.mxu0 0.0
  %286 = vmatprep.subr.mxu0 0.0
  %287 = vmatpush1.msra.mxu0 0.0
  %288 = vmatprep.subr.mxu0 0.0
  %289 = vmatpush1.msra.mxu0 0.0
  %290 = vmatprep.subr.mxu0 0.0
  %291 = vmatpush1.msra.mxu0 0.0
  %292 = vmatprep.subr.mxu0 0.0
  %293 = vmatpush1.msra.mxu0 0.0
  %294 = vmatprep.subr.mxu0 0.0
  %295 = vmatpush1.msra.mxu0 %v234
  %296 = vmatprep.subr.mxu0 0.0
  %297 = vmatpush1.msra.mxu0 %v229
  %298 = vmatprep.subr.mxu0 0.0
  %299 = vmatpush1.msra.mxu0 %v224
  %300 = vmatprep.subr.mxu0 0.0
  %301 = vmatpush1.msra.mxu0 %v219
  %302 = vmatprep.subr.mxu0 0.0
  %303 = vmatpush1.msra.mxu0 %v214
  %304 = vmatprep.subr.mxu0 0.0
  %305 = vmatpush1.msra.mxu0 %v209
  %306 = vmatprep.subr.mxu0 0.0
  %307 = vmatpush1.msra.mxu0 %v204
  %308 = vmatprep.subr.mxu0 0.0
  %309 = vmatpush1.msra.mxu0 %v199
  %310 = vmatprep.subr.mxu0 0.0
  %311 = vmatpush2.msra.mxu0 0.0
  %312 = vmatprep.subr.mxu0 0.0
  %313 = vmatpush2.msra.mxu0 0.0
  %314 = vmatprep.subr.mxu0 0.0
  %315 = vmatpush2.msra.mxu0 0.0
  %316 = vmatprep.subr.mxu0 0.0
  %317 = vmatpush2.msra.mxu0 0.0
  %318 = vmatprep.subr.mxu0 0.0
  %319 = vmatpush2.msra.mxu0 0.0
  %320 = vmatprep.subr.mxu0 0.0
  %321 = vmatpush2.msra.mxu0 0.0
  %322 = vmatprep.subr.mxu0 0.0
  %323 = vmatpush2.msra.mxu0 0.0
  %324 = vmatprep.subr.mxu0 0.0
  %325 = vmatpush2.msra.mxu0 0.0
  %326 = vmatprep.subr.mxu0 0.0
  %327 = vmatpush2.msra.mxu0 0.0
  %328 = vmatprep.subr.mxu0 0.0
  %329 = vmatpush2.msra.mxu0 0.0
  %330 = vmatprep.subr.mxu0 0.0
  %331 = vmatpush2.msra.mxu0 0.0
  %332 = vmatprep.subr.mxu0 0.0
  %333 = vmatpush2.msra.mxu0 0.0
  %334 = vmatprep.subr.mxu0 0.0
  %335 = vmatpush2.msra.mxu0 0.0
  %336 = vmatprep.subr.mxu0 0.0
  %337 = vmatpush2.msra.mxu0 0.0
  %338 = vmatprep.subr.mxu0 0.0
  %339 = vmatpush2.msra.mxu0 0.0
  %340 = vmatprep.subr.mxu0 0.0
  %341 = vmatpush2.msra.mxu0 0.0
  %342 = vmatprep.mubr.f32.mxu0 0.0
  %343 = vmatmul.mubr.f32.gmra.mxu0 %v267
  %v344 = vpop.f32.mrf.mxu0
  %v345 = vadd.f32 %v248, %v344
  %v346 = vpop.f32.mrf.mxu0
  %347 = vmatprep.mubr.f32.mxu0 0.0
  %348 = vmatmul.mubr.f32.gmra.mxu0 %v270
  %v349 = vpop.f32.mrf.mxu0
  %v350 = vadd.f32 %v253, %v349
  %v351 = vpop.f32.mrf.mxu0
  %352 = vmatprep.mubr.f32.mxu0 0.0
  %353 = vmatmul.mubr.f32.gmra.mxu0 %v273
  %v354 = vpop.f32.mrf.mxu0
  %v355 = vadd.f32 %v258, %v354
  %v356 = vpop.f32.mrf.mxu0
  %357 = vmatprep.mubr.f32.mxu0 0.0
  %358 = vmatmul.mubr.f32.gmra.mxu0 %v276
  %v359 = vpop.f32.mrf.mxu0
  %v360 = vadd.f32 %v263, %v359
  %v361 = vpop.f32.mrf.mxu0
  %362 = vdwg.mxu0
  %v363 = vtanh.pop %v345
  %v364 = vtanh.pop %v350
  %v365 = vtanh.pop %v355
  %v366 = vtanh.pop %v360
  %v367 = vld [vmem:[%s5] sm:$0xff]
  %v368 = vld [vmem:[%s5 + $0x8] sm:$0xff]
  %v369 = vld [vmem:[%s6] sm:$0xff]
  %v370 = vld [vmem:[%s6 + $0x8] sm:$0xff]
  %372 = vset.pattern.permute.xlu0 0
  %373 = vperm.xlu0 %372, %v369
  %v374 = vpop.permute.xlu0 %373
  %377 = vset.pattern.permute.xlu0 0
  %378 = vperm.xlu0 %377, %v370
  %v379 = vpop.permute.xlu0 %378
  %vm381 = vcmask 261120
  %v383 = vsel %vm381, %v367, 0
  %v386 = vsel %vm381, %v368, 0
  %388 = vmatprep.subr.mxu0 0.0
  %389 = vmatpush1.msra.mxu0 0.0
  %390 = vmatprep.subr.mxu0 0.0
  %391 = vmatpush1.msra.mxu0 0.0
  %392 = vmatprep.subr.mxu0 0.0
  %393 = vmatpush1.msra.mxu0 0.0
  %394 = vmatprep.subr.mxu0 0.0
  %395 = vmatpush1.msra.mxu0 0.0
  %396 = vmatprep.subr.mxu0 0.0
  %397 = vmatpush1.msra.mxu0 0.0
  %398 = vmatprep.subr.mxu0 0.0
  %399 = vmatpush1.msra.mxu0 0.0
  %400 = vmatprep.subr.mxu0 0.0
  %401 = vmatpush1.msra.mxu0 0.0
  %402 = vmatprep.subr.mxu0 0.0
  %403 = vmatpush1.msra.mxu0 0.0
  %404 = vmatprep.subr.mxu0 0.0
  %405 = vmatpush1.msra.mxu0 0.0
  %406 = vmatprep.subr.mxu0 0.0
  %407 = vmatpush1.msra.mxu0 0.0
  %408 = vmatprep.subr.mxu0 0.0
  %409 = vmatpush1.msra.mxu0 0.0
  %410 = vmatprep.subr.mxu0 0.0
  %411 = vmatpush1.msra.mxu0 0.0
  %412 = vmatprep.subr.mxu0 0.0
  %413 = vmatpush1.msra.mxu0 %v366
  %414 = vmatprep.subr.mxu0 0.0
  %415 = vmatpush1.msra.mxu0 %v365
  %416 = vmatprep.subr.mxu0 0.0
  %417 = vmatpush1.msra.mxu0 %v364
  %418 = vmatprep.subr.mxu0 0.0
  %419 = vmatpush1.msra.mxu0 %v363
  %420 = vmatprep.subr.mxu0 0.0
  %421 = vmatpush2.msra.mxu0 0.0
  %422 = vmatprep.subr.mxu0 0.0
  %423 = vmatpush2.msra.mxu0 0.0
  %424 = vmatprep.subr.mxu0 0.0
  %425 = vmatpush2.msra.mxu0 0.0
  %426 = vmatprep.subr.mxu0 0.0
  %427 = vmatpush2.msra.mxu0 0.0
  %428 = vmatprep.subr.mxu0 0.0
  %429 = vmatpush2.msra.mxu0 0.0
  %430 = vmatprep.subr.mxu0 0.0
  %431 = vmatpush2.msra.mxu0 0.0
  %432 = vmatprep.subr.mxu0 0.0
  %433 = vmatpush2.msra.mxu0 0.0
  %434 = vmatprep.subr.mxu0 0.0
  %435 = vmatpush2.msra.mxu0 0.0
  %436 = vmatprep.subr.mxu0 0.0
  %437 = vmatpush2.msra.mxu0 0.0
  %438 = vmatprep.subr.mxu0 0.0
  %439 = vmatpush2.msra.mxu0 0.0
  %440 = vmatprep.subr.mxu0 0.0
  %441 = vmatpush2.msra.mxu0 0.0
  %442 = vmatprep.subr.mxu0 0.0
  %443 = vmatpush2.msra.mxu0 0.0
  %444 = vmatprep.subr.mxu0 0.0
  %445 = vmatpush2.msra.mxu0 0.0
  %446 = vmatprep.subr.mxu0 0.0
  %447 = vmatpush2.msra.mxu0 0.0
  %448 = vmatprep.subr.mxu0 0.0
  %449 = vmatpush2.msra.mxu0 0.0
  %450 = vmatprep.subr.mxu0 0.0
  %451 = vmatpush2.msra.mxu0 0.0
  %452 = vmatprep.mubr.f32.mxu0 0.0
  %453 = vmatmul.mubr.f32.gmra.mxu0 %v383
  %v454 = vpop.f32.mrf.mxu0
  %v455 = vadd.f32 %v374, %v454
  %v456 = vpop.f32.mrf.mxu0
  %457 = vmatprep.mubr.f32.mxu0 0.0
  %458 = vmatmul.mubr.f32.gmra.mxu0 %v386
  %v459 = vpop.f32.mrf.mxu0
  %v460 = vadd.f32 %v379, %v459
  %v461 = vpop.f32.mrf.mxu0
  %462 = vdwg.mxu0
  %v463 = vtanh.pop %v455
  %v464 = vtanh.pop %v460
  %v465 = vld [vmem:[%s7] sm:$0xff]
  %v466 = vld [vmem:[%s7 + $0x8] sm:$0xff]
  %v467 = vld [vmem:[%s8] sm:$0xff]
  %v468 = vld [vmem:[%s8 + $0x8] sm:$0xff]
  %470 = vset.pattern.permute.xlu0 0
  %471 = vperm.xlu0 %470, %v467
  %v472 = vpop.permute.xlu0 %471
  %475 = vset.pattern.permute.xlu0 0
  %476 = vperm.xlu0 %475, %v468
  %v477 = vpop.permute.xlu0 %476
  %vm479 = vcmask 130048
  %v481 = vsel %vm479, %v465, 0
  %v484 = vsel %vm479, %v466, 0
  %486 = vmatprep.subr.mxu0 0.0
  %487 = vmatpush1.msra.mxu0 0.0
  %488 = vmatprep.subr.mxu0 0.0
  %489 = vmatpush1.msra.mxu0 0.0
  %490 = vmatprep.subr.mxu0 0.0
  %491 = vmatpush1.msra.mxu0 0.0
  %492 = vmatprep.subr.mxu0 0.0
  %493 = vmatpush1.msra.mxu0 0.0
  %494 = vmatprep.subr.mxu0 0.0
  %495 = vmatpush1.msra.mxu0 0.0
  %496 = vmatprep.subr.mxu0 0.0
  %497 = vmatpush1.msra.mxu0 0.0
  %498 = vmatprep.subr.mxu0 0.0
  %499 = vmatpush1.msra.mxu0 0.0
  %500 = vmatprep.subr.mxu0 0.0
  %501 = vmatpush1.msra.mxu0 0.0
  %502 = vmatprep.subr.mxu0 0.0
  %503 = vmatpush1.msra.mxu0 0.0
  %504 = vmatprep.subr.mxu0 0.0
  %505 = vmatpush1.msra.mxu0 0.0
  %506 = vmatprep.subr.mxu0 0.0
  %507 = vmatpush1.msra.mxu0 0.0
  %508 = vmatprep.subr.mxu0 0.0
  %509 = vmatpush1.msra.mxu0 0.0
  %510 = vmatprep.subr.mxu0 0.0
  %511 = vmatpush1.msra.mxu0 0.0
  %512 = vmatprep.subr.mxu0 0.0
  %513 = vmatpush1.msra.mxu0 0.0
  %514 = vmatprep.subr.mxu0 0.0
  %515 = vmatpush1.msra.mxu0 %v464
  %516 = vmatprep.subr.mxu0 0.0
  %517 = vmatpush1.msra.mxu0 %v463
  %518 = vmatprep.subr.mxu0 0.0
  %519 = vmatpush2.msra.mxu0 0.0
  %520 = vmatprep.subr.mxu0 0.0
  %521 = vmatpush2.msra.mxu0 0.0
  %522 = vmatprep.subr.mxu0 0.0
  %523 = vmatpush2.msra.mxu0 0.0
  %524 = vmatprep.subr.mxu0 0.0
  %525 = vmatpush2.msra.mxu0 0.0
  %526 = vmatprep.subr.mxu0 0.0
  %527 = vmatpush2.msra.mxu0 0.0
  %528 = vmatprep.subr.mxu0 0.0
  %529 = vmatpush2.msra.mxu0 0.0
  %530 = vmatprep.subr.mxu0 0.0
  %531 = vmatpush2.msra.mxu0 0.0
  %532 = vmatprep.subr.mxu0 0.0
  %533 = vmatpush2.msra.mxu0 0.0
  %534 = vmatprep.subr.mxu0 0.0
  %535 = vmatpush2.msra.mxu0 0.0
  %536 = vmatprep.subr.mxu0 0.0
  %537 = vmatpush2.msra.mxu0 0.0
  %538 = vmatprep.subr.mxu0 0.0
  %539 = vmatpush2.msra.mxu0 0.0
  %540 = vmatprep.subr.mxu0 0.0
  %541 = vmatpush2.msra.mxu0 0.0
  %542 = vmatprep.subr.mxu0 0.0
  %543 = vmatpush2.msra.mxu0 0.0
  %544 = vmatprep.subr.mxu0 0.0
  %545 = vmatpush2.msra.mxu0 0.0
  %546 = vmatprep.subr.mxu0 0.0
  %547 = vmatpush2.msra.mxu0 0.0
  %548 = vmatprep.subr.mxu0 0.0
  %549 = vmatpush2.msra.mxu0 0.0
  %550 = vmatprep.mubr.f32.mxu0 0.0
  %551 = vmatmul.mubr.f32.gmra.mxu0 %v481
  %v552 = vpop.f32.mrf.mxu0
  %v553 = vadd.f32 %v472, %v552
  %v554 = vpop.f32.mrf.mxu0
  %555 = vmatprep.mubr.f32.mxu0 0.0
  %556 = vmatmul.mubr.f32.gmra.mxu0 %v484
  %v557 = vpop.f32.mrf.mxu0
  %v558 = vadd.f32 %v477, %v557
  %v559 = vpop.f32.mrf.mxu0
  %560 = vdwg.mxu0
  %v561 = vtanh.pop %v553
  %v562 = vtanh.pop %v558
  %v563 = vld [vmem:[%s9] sm:$0xff]
  %v564 = vld [vmem:[%s10] sm:$0xff]
  %566 = vset.pattern.permute.xlu0 0
  %567 = vperm.xlu0 %566, %v564
  %v568 = vpop.permute.xlu0 %567
  %v571 = vsel %vm479, %v563, 0
  %573 = vmatprep.subr.mxu0 0.0
  %574 = vmatpush1.msra.mxu0 0.0
  %575 = vmatprep.subr.mxu0 0.0
  %576 = vmatpush1.msra.mxu0 0.0
  %577 = vmatprep.subr.mxu0 0.0
  %578 = vmatpush1.msra.mxu0 0.0
  %579 = vmatprep.subr.mxu0 0.0
  %580 = vmatpush1.msra.mxu0 0.0
  %581 = vmatprep.subr.mxu0 0.0
  %582 = vmatpush1.msra.mxu0 0.0
  %583 = vmatprep.subr.mxu0 0.0
  %584 = vmatpush1.msra.mxu0 0.0
  %585 = vmatprep.subr.mxu0 0.0
  %586 = vmatpush1.msra.mxu0 0.0
  %587 = vmatprep.subr.mxu0 0.0
  %588 = vmatpush1.msra.mxu0 0.0
  %589 = vmatprep.subr.mxu0 0.0
  %590 = vmatpush1.msra.mxu0 0.0
  %591 = vmatprep.subr.mxu0 0.0
  %592 = vmatpush1.msra.mxu0 0.0
  %593 = vmatprep.subr.mxu0 0.0
  %594 = vmatpush1.msra.mxu0 0.0
  %595 = vmatprep.subr.mxu0 0.0
  %596 = vmatpush1.msra.mxu0 0.0
  %597 = vmatprep.subr.mxu0 0.0
  %598 = vmatpush1.msra.mxu0 0.0
  %599 = vmatprep.subr.mxu0 0.0
  %600 = vmatpush1.msra.mxu0 0.0
  %601 = vmatprep.subr.mxu0 0.0
  %602 = vmatpush1.msra.mxu0 %v562
  %603 = vmatprep.subr.mxu0 0.0
  %604 = vmatpush1.msra.mxu0 %v561
  %605 = vmatprep.subr.mxu0 0.0
  %606 = vmatpush2.msra.mxu0 0.0
  %607 = vmatprep.subr.mxu0 0.0
  %608 = vmatpush2.msra.mxu0 0.0
  %609 = vmatprep.subr.mxu0 0.0
  %610 = vmatpush2.msra.mxu0 0.0
  %611 = vmatprep.subr.mxu0 0.0
  %612 = vmatpush2.msra.mxu0 0.0
  %613 = vmatprep.subr.mxu0 0.0
  %614 = vmatpush2.msra.mxu0 0.0
  %615 = vmatprep.subr.mxu0 0.0
  %616 = vmatpush2.msra.mxu0 0.0
  %617 = vmatprep.subr.mxu0 0.0
  %618 = vmatpush2.msra.mxu0 0.0
  %619 = vmatprep.subr.mxu0 0.0
  %620 = vmatpush2.msra.mxu0 0.0
  %621 = vmatprep.subr.mxu0 0.0
  %622 = vmatpush2.msra.mxu0 0.0
  %623 = vmatprep.subr.mxu0 0.0
  %624 = vmatpush2.msra.mxu0 0.0
  %625 = vmatprep.subr.mxu0 0.0
  %626 = vmatpush2.msra.mxu0 0.0
  %627 = vmatprep.subr.mxu0 0.0
  %628 = vmatpush2.msra.mxu0 0.0
  %629 = vmatprep.subr.mxu0 0.0
  %630 = vmatpush2.msra.mxu0 0.0
  %631 = vmatprep.subr.mxu0 0.0
  %632 = vmatpush2.msra.mxu0 0.0
  %633 = vmatprep.subr.mxu0 0.0
  %634 = vmatpush2.msra.mxu0 0.0
  %635 = vmatprep.subr.mxu0 0.0
  %636 = vmatpush2.msra.mxu0 0.0
  %637 = vmatprep.mubr.f32.mxu0 0.0
  %638 = vmatmul.mubr.f32.gmra.mxu0 %v571
  %v639 = vpop.f32.mrf.mxu0
  %v640 = vadd.f32 %v568, %v639
  %v641 = vpop.f32.mrf.mxu0
  %642 = vdwg.mxu0
  %v643 = vtanh.pop %v640
  %v644 = vld [vmem:[%s11] sm:$0x1]
  %v645 = vld [vmem:[#allocation2] sm:$0x1]
  %647 = vset.pattern.permute.xlu0 0
  %648 = vperm.xlu0 %647, %v645
  %v649 = vpop.permute.xlu0 %648
  %v651 = vlaneseq
  %v652 = vshrl.u32 %v651, 7
  %v653 = vsub.s32 0, %v652
  %v654 = vrot.slane %v649, %v653
  %vm655 = vcmask 64512
  %v657 = vsel %vm655, %v644, 0
  %659 = vmatprep.subr.mxu0 0.0
  %660 = vmatpush1.msra.mxu0 0.0
  %661 = vmatprep.subr.mxu0 0.0
  %662 = vmatpush1.msra.mxu0 0.0
  %663 = vmatprep.subr.mxu0 0.0
  %664 = vmatpush1.msra.mxu0 0.0
  %665 = vmatprep.subr.mxu0 0.0
  %666 = vmatpush1.msra.mxu0 0.0
  %667 = vmatprep.subr.mxu0 0.0
  %668 = vmatpush1.msra.mxu0 0.0
  %669 = vmatprep.subr.mxu0 0.0
  %670 = vmatpush1.msra.mxu0 0.0
  %671 = vmatprep.subr.mxu0 0.0
  %672 = vmatpush1.msra.mxu0 0.0
  %673 = vmatprep.subr.mxu0 0.0
  %674 = vmatpush1.msra.mxu0 0.0
  %675 = vmatprep.subr.mxu0 0.0
  %676 = vmatpush1.msra.mxu0 0.0
  %677 = vmatprep.subr.mxu0 0.0
  %678 = vmatpush1.msra.mxu0 0.0
  %679 = vmatprep.subr.mxu0 0.0
  %680 = vmatpush1.msra.mxu0 0.0
  %681 = vmatprep.subr.mxu0 0.0
  %682 = vmatpush1.msra.mxu0 0.0
  %683 = vmatprep.subr.mxu0 0.0
  %684 = vmatpush1.msra.mxu0 0.0
  %685 = vmatprep.subr.mxu0 0.0
  %686 = vmatpush1.msra.mxu0 0.0
  %687 = vmatprep.subr.mxu0 0.0
  %688 = vmatpush1.msra.mxu0 0.0
  %689 = vmatprep.subr.mxu0 0.0
  %690 = vmatpush1.msra.mxu0 %v643
  %691 = vmatprep.subr.mxu0 0.0
  %692 = vmatpush2.msra.mxu0 0.0
  %693 = vmatprep.subr.mxu0 0.0
  %694 = vmatpush2.msra.mxu0 0.0
  %695 = vmatprep.subr.mxu0 0.0
  %696 = vmatpush2.msra.mxu0 0.0
  %697 = vmatprep.subr.mxu0 0.0
  %698 = vmatpush2.msra.mxu0 0.0
  %699 = vmatprep.subr.mxu0 0.0
  %700 = vmatpush2.msra.mxu0 0.0
  %701 = vmatprep.subr.mxu0 0.0
  %702 = vmatpush2.msra.mxu0 0.0
  %703 = vmatprep.subr.mxu0 0.0
  %704 = vmatpush2.msra.mxu0 0.0
  %705 = vmatprep.subr.mxu0 0.0
  %706 = vmatpush2.msra.mxu0 0.0
  %707 = vmatprep.subr.mxu0 0.0
  %708 = vmatpush2.msra.mxu0 0.0
  %709 = vmatprep.subr.mxu0 0.0
  %710 = vmatpush2.msra.mxu0 0.0
  %711 = vmatprep.subr.mxu0 0.0
  %712 = vmatpush2.msra.mxu0 0.0
  %713 = vmatprep.subr.mxu0 0.0
  %714 = vmatpush2.msra.mxu0 0.0
  %715 = vmatprep.subr.mxu0 0.0
  %716 = vmatpush2.msra.mxu0 0.0
  %717 = vmatprep.subr.mxu0 0.0
  %718 = vmatpush2.msra.mxu0 0.0
  %719 = vmatprep.subr.mxu0 0.0
  %720 = vmatpush2.msra.mxu0 0.0
  %721 = vmatprep.subr.mxu0 0.0
  %722 = vmatpush2.msra.mxu0 0.0
  %723 = vmatprep.mubr.f32.mxu0 0.0
  %724 = vmatmul.mubr.f32.gmra.mxu0 %v657
  %v725 = vpop.f32.mrf.mxu0
  %v726 = vadd.f32 %v654, %v725
  %v727 = vpop.f32.mrf.mxu0
  %728 = vdwg.mxu0
  %729 = vst [vmem:[%s13] sm:$0x1] %v726
  // Predicated region
  $region54: #{mlp_forward.1} parent=0 // pred_check
    _
  $region55: #{mlp_forward.1} parent=0 // pred_check_branch
    %731 = sbr.rel (0) target = $region57
  $region56: #{mlp_forward.1} parent=0 // pred_region
    _
  $region57: #{mlp_forward.1} parent=0 // pred_fallthru
    _
  // Predicated region
  $region58: #{mlp_forward.1} parent=0 // pred_check
    _
  $region59: #{mlp_forward.1} parent=0 // pred_check_branch
    %733 = sbr.rel (0) target = $region61
  $region60: #{mlp_forward.1} parent=0 // pred_region
    _
  $region61: #{mlp_forward.1} parent=0 // pred_fallthru
    _

</llo_original>
